<compile_context>
chip_gen: v7x
topology: tpu7x:2x2x1
jax: 0.10.0
libtpu: 0.0.40
codegen_flags: <defaults>
</compile_context>

<pallas_src>
import functools
import math

import jax
import jax.numpy as jnp
from jax.experimental import pallas as pl
from jax.experimental.pallas import tpu as pltpu


def _qi_kernel(s_ref, o_ref, *, scale, bias):
    # Elementwise: sigmoid(s * scale + bias), computed in f32 (EUP exp + recip).
    z = s_ref[...].astype(jnp.float32) * scale + bias
    o_ref[...] = jax.nn.sigmoid(z).astype(o_ref.dtype)


def _round_up(x: int, m: int) -> int:
    return ((x + m - 1) // m) * m


def qualitative_improvement_forward(
    samples: jax.Array,
    best_f: float = 0.0,
    tau: float = 0.01,
    maximize: bool = True,
) -> jax.Array:
    """Probability-of-improvement style MC utility over posterior samples.

    Args:
        samples: `num_samples x ...` array of posterior samples.
        best_f: incumbent best observed value (static Python float).
        tau: temperature of the sigmoid smoothing (static Python float).
        maximize: direction of improvement.

    Returns:
        Array of the same shape/dtype as `samples` with utility values.
    """
    orig_shape = samples.shape
    dtype = samples.dtype
    total = int(math.prod(orig_shape)) if orig_shape else 1
    itemsize = jnp.dtype(dtype).itemsize

    # --- balanced lane-dense 2D slab -------------------------------------
    C = 1024  # lane-dense column width (multiple of 128)
    rows_needed = max(1, pl.cdiv(total, C))

    # Block sizing: ~4 MiB per block; keep sublane-aligned (multiple of 8).
    target_block_bytes = 4 * 1024 * 1024
    block_rows = max(1, target_block_bytes // (C * itemsize))
    if rows_needed > 8:
        # Guarantee >=2 grid steps so both v7x TensorCores get work, and keep
        # block_rows a multiple of 8 for unpadded (8,128) tiling.
        block_rows = min(block_rows, _round_up(pl.cdiv(rows_needed, 2), 8))
        block_rows = max(8, (block_rows // 8) * 8)
    else:
        block_rows = rows_needed

    rows_padded = _round_up(rows_needed, block_rows)
    padded_total = rows_padded * C
    num_blocks = rows_padded // block_rows

    flat = samples.reshape(-1)
    if padded_total != total:
        flat = jnp.pad(flat, (0, padded_total - total))
    x2d = flat.reshape(rows_padded, C)

    # --- fold constants ----------------------------------------------------
    sign = 1.0 if maximize else -1.0
    scale = float(sign) / float(tau)
    bias = -float(best_f) * scale
    kernel = functools.partial(_qi_kernel, scale=scale, bias=bias)

    cost = pl.CostEstimate(
        flops=2 * padded_total,
        transcendentals=padded_total,
        bytes_accessed=2 * padded_total * itemsize,
    )

    out2d = pl.pallas_call(
        kernel,
        out_shape=jax.ShapeDtypeStruct((rows_padded, C), dtype),
        grid=(num_blocks,),
        in_specs=[pl.BlockSpec((block_rows, C), lambda i: (i, 0))],
        out_specs=pl.BlockSpec((block_rows, C), lambda i: (i, 0)),
        compiler_params=pltpu.CompilerParams(
            dimension_semantics=("parallel",),
            vmem_limit_bytes=32 * 1024 * 1024,
        ),
        cost_estimate=cost,
    )(x2d)

    return out2d.reshape(-1)[:total].reshape(orig_shape)


if __name__ == "__main__":
    key = jax.random.PRNGKey(0)
    best_f = 0.1
    tau = 0.01

    # Case 1: num_samples=8, batch*q=16, outcome dim=128 (already lane-dense).
    samples = jax.random.normal(key, (8, 16, 128), dtype=jnp.float32)

    out_max = qualitative_improvement_forward(samples, best_f, tau, maximize=True)
    out_max = jax.block_until_ready(out_max)
    ref_max = jax.nn.sigmoid((samples - best_f) / tau)
    assert out_max.shape == samples.shape
    assert jnp.allclose(out_max, ref_max, atol=1e-5, rtol=1e-5)

    out_min = qualitative_improvement_forward(samples, best_f, tau, maximize=False)
    out_min = jax.block_until_ready(out_min)
    ref_min = jax.nn.sigmoid((best_f - samples) / tau)
    assert jnp.allclose(out_min, ref_min, atol=1e-5, rtol=1e-5)

    # Case 2: odd, non-128-multiple shape (exercises the padded reshape path,
    # e.g. single-outcome BO with small q).
    key2 = jax.random.PRNGKey(1)
    samples2 = jax.random.normal(key2, (4, 7, 5), dtype=jnp.float32)
    out2 = qualitative_improvement_forward(samples2, best_f, tau, maximize=True)
    out2 = jax.block_until_ready(out2)
    ref2 = jax.nn.sigmoid((samples2 - best_f) / tau)
    assert out2.shape == samples2.shape
    assert jnp.allclose(out2, ref2, atol=1e-5, rtol=1e-5)

    print("KERNEL_OK")
</pallas_src>

<mosaic_0001>
module attributes {stable_mosaic.version = 11 : i64} {
  func.func @_qi_kernel(%arg0: i32, %arg1: memref<8x1024xf32, #tpu.memory_space<vmem>>, %arg2: memref<8x1024xf32, #tpu.memory_space<vmem>>) attributes {dimension_semantics = [#tpu.dimension_semantics<parallel>], iteration_bounds = array<i64: 2>, scalar_prefetch = 0 : i64, scratch_operands = 0 : i64, tpu.core_type = #tpu.core_type<tc>, window_params = [{transform_indices = @transform_0, window_bounds = array<i64: 8, 1024>}, {transform_indices = @transform_1, window_bounds = array<i64: 8, 1024>}]} {
    %c0 = arith.constant 0 : index
    %c0_0 = arith.constant 0 : index
    %0 = vector.load %arg1[%c0, %c0_0] : memref<8x1024xf32, #tpu.memory_space<vmem>>, vector<8x1024xf32>
    %cst = arith.constant 1.000000e+02 : f32
    %1 = vector.broadcast %cst : f32 to vector<8x1024xf32>
    %2 = arith.mulf %0, %1 : vector<8x1024xf32>
    %cst_1 = arith.constant -1.000000e+01 : f32
    %3 = vector.broadcast %cst_1 : f32 to vector<8x1024xf32>
    %4 = arith.addf %2, %3 : vector<8x1024xf32>
    %5 = arith.negf %4 : vector<8x1024xf32>
    %6 = math.exp %5 : vector<8x1024xf32>
    %cst_2 = arith.constant 1.000000e+00 : f32
    %7 = vector.broadcast %cst_2 : f32 to vector<8x1024xf32>
    %8 = arith.addf %7, %6 : vector<8x1024xf32>
    %9 = arith.divf %7, %8 : vector<8x1024xf32>
    %c0_3 = arith.constant 0 : index
    %c0_4 = arith.constant 0 : index
    %10 = vector.load %arg2[%c0_3, %c0_4] : memref<8x1024xf32, #tpu.memory_space<vmem>>, vector<8x1024xf32>
    tpu.vector_store %arg2[%c0_3, %c0_4], %9 {strides = array<i32>} : memref<8x1024xf32, #tpu.memory_space<vmem>>, vector<8x1024xf32>,
    return
  }
  func.func @transform_0(%arg0: i32) -> (i32, i32) {
    %c0_i32 = arith.constant 0 : i32
    %c0_i32_0 = arith.constant 0 : i32
    return %arg0, %c0_i32 : i32, i32
  }
  func.func @transform_1(%arg0: i32) -> (i32, i32) {
    %c0_i32 = arith.constant 0 : i32
    %c0_i32_0 = arith.constant 0 : i32
    return %arg0, %c0_i32 : i32, i32
  }
}

</mosaic_0001>

<llo_original>
// kernel: tpu_custom_call.1
$region0: #{tpu_custom_call.1}
  #allocation0 [shape = 'u32[]', space=smem, size = 0x4, offset = 0x4, fixed_abs, tag = 'smem constant byte address 0x4 - core index']
  #allocation1 [shape = 'u32[144,128]{1,0:T(1,128)}', space=vmem, size = 0x12000, scoped, tag = 'internal scratch']
  %s0 = inlined_call_operand.hbm [shape: f32[16,1024], index: 0, kind: input, shape index: {}]
  %s1 = inlined_call_operand.hbm [shape: f32[16,1024], index: 1, kind: output, shape index: {}]
  %s2 = sld [smem:[#allocation0]]
  $region41: #{tpu_custom_call.1} parent=0
    _
  %s4 = ssub.s32 1, %s2
  %s5 = scalar_select 0, %s4, %s2
  $region1: #{tpu_custom_call.1} parent=0
    #allocation2 [shape = 'u8[65536]{0}', space=vmem, size = 0x10000, scoped, tag = 'input window, operand 0']
    #allocation3 [shape = 's32[2]{0}', space=sflag, size = 0x8, scoped, tag = 'scoped memory for tpu_custom_call.1']
    #allocation4 [shape = 's32[2]{0}', space=sflag, size = 0x8, scoped, tag = 'scoped memory for tpu_custom_call.1']
    #allocation5 [shape = 'u8[65536]{0}', space=vmem, size = 0x10000, scoped, tag = 'output window, operand 0']
    %6 = vsyncpa [#allocation3], 0
    %s7 = scalar_lea.sflag [#allocation3], 1
    %8 = vsyncpa %s7, 0
    %9 = vsyncpa [#allocation4], 0
    %s10 = scalar_lea.sflag [#allocation4], 1
    %11 = vsyncpa %s10, 0
    loop: start=0, step=1, limit=4
    $region2: #{tpu_custom_call.1} parent=1 // loop_pre_header
      _
    $region3: #{tpu_custom_call.1} parent=1 // loop_header
      %s13 = sphi 0, %s17
      %p14 = scmp.ge.s32.totalorder %s13, 4
      %s23 = sphi 0, %s25
      %s26 = sphi 0, %s23
      %s27 = sphi 0, %s26
      %s43 = sphi 0, %s27
      %s49 = sphi 0, %s51
      %s52 = sphi 0, %s49
      %s53 = sphi 0, %s52
      %s69 = sphi 0, %s53
    $region4: #{tpu_custom_call.1} parent=1 // loop_header_branch
      %16 = sbr.rel (%p14) target = $region8
    $region5: #{tpu_custom_call.1} parent=1 // loop_body
      %s18 = ssub.s32 %s13, 1
      %s19 = ssub.s32 %s13, 2
      %s20 = sadd.s32 %s13, 1
      %s21 = ssub.s32 %s13, %s20
      %p22 = scmp.eq.s32.totalorder %s21, 0
      %s24 = sadd.s32 %s23, 1
      %s25 = scalar_select %p22, %s23, %s24
      %p28 = pneg %p22
      %p29 = scmp.eq.s32.totalorder %s13, 1
      %p30 = por %p28, %p29
      %p31 = scmp.ne.s32.totalorder %s23, %s26
      %p32 = scmp.eq.s32.totalorder %s13, 0
      %p33 = por %p31, %p32
      %p34 = scmp.ne.s32.totalorder %s23, %s26
      %p35 = scmp.eq.s32.totalorder %s18, 1
      %p36 = por %p34, %p35
      %p37 = scmp.ne.s32.totalorder %s26, %s27
      %p38 = scmp.eq.s32.totalorder %s18, 0
      %p39 = por %p37, %p38
      %p40 = scmp.ne.s32.totalorder %s26, %s27
      %p41 = scmp.eq.s32.totalorder %s19, 1
      %p42 = por %p40, %p41
      %p44 = scmp.ne.s32.totalorder %s27, %s43
      %p45 = scmp.eq.s32.totalorder %s19, 0
      %p46 = por %p44, %p45
      %s47 = ssub.s32 %s13, %s20
      %p48 = scmp.eq.s32.totalorder %s47, 0
      %s50 = sadd.s32 %s49, 1
      %s51 = scalar_select %p48, %s49, %s50
      %p54 = pneg %p48
      %p55 = scmp.eq.s32.totalorder %s13, 1
      %p56 = por %p54, %p55
      %p57 = scmp.ne.s32.totalorder %s49, %s52
      %p58 = scmp.eq.s32.totalorder %s13, 0
      %p59 = por %p57, %p58
      %p60 = scmp.ne.s32.totalorder %s49, %s52
      %p61 = scmp.eq.s32.totalorder %s18, 1
      %p62 = por %p60, %p61
      %p63 = scmp.ne.s32.totalorder %s52, %s53
      %p64 = scmp.eq.s32.totalorder %s18, 0
      %p65 = por %p63, %p64
      %p66 = scmp.ne.s32.totalorder %s52, %s53
      %p67 = scmp.eq.s32.totalorder %s19, 1
      %p68 = por %p66, %p67
      %p70 = scmp.ne.s32.totalorder %s53, %s69
      %p71 = scmp.eq.s32.totalorder %s19, 0
      %p72 = por %p70, %p71
      %p73 = scmp.le.s32.totalorder 1, %s13
      %p74 = scmp.lt.s32.totalorder %s13, 3
      %p75 = pnand %p73, %p74
      %p76 = pneg %p75
      // Predicated region
      $region9: #{tpu_custom_call.1} parent=5 // pred_check
        _
      $region10: #{tpu_custom_call.1} parent=5 // pred_check_branch
        %78 = sbr.rel (%p75) target = $region12
      $region11: #{tpu_custom_call.1} parent=5 // pred_region
        %s79 = ssub.s32 %s13, 1
      $region12: #{tpu_custom_call.1} parent=5 // pred_fallthru
        _
      %p80 = scmp.lt.s32.totalorder %s13, 2
      // Predicated region
      $region13: #{tpu_custom_call.1} parent=5 // pred_check
        %p81 = pneg %p80
      $region14: #{tpu_custom_call.1} parent=5 // pred_check_branch
        %83 = sbr.rel (%p81) target = $region16
      $region15: #{tpu_custom_call.1} parent=5 // pred_region
        // Predicated region
        $region17: #{tpu_custom_call.1} parent=15 // pred_check
          %p84 = pneg %p33
        $region18: #{tpu_custom_call.1} parent=15 // pred_check_branch
          %86 = sbr.rel (%p84) target = $region20
        $region19: #{tpu_custom_call.1} parent=15 // pred_region
          %s87 = sand.u32 %s23, 1
          %s88 = scalar_lea.sflag [#allocation3], %s87
          %s89 = sand.u32 %s23, 1
          %s90 = smul.addr %s89, 64
          %s91 = scalar_lea.vmem [#allocation2], %s90
          %s93 = ssub.s32 1024, 1024
          %94 = vsyncadd %s88, %s93
          %s95 = smul.addr %s13, 8
          %s96 = smul.addr %s95, 128
          %s97 = scalar_lea.hbm %s0, %s96
          %s99 = sshll.u32 %s91, 4
          %s100 = int_to_ptr.vmem [resolvable:$true] %s99
          %102 = dma.hbm_to_vmem [thread:$0]  %s97, 1024, %s100, %s88
        $region20: #{tpu_custom_call.1} parent=15 // pred_fallthru
          _
      $region16: #{tpu_custom_call.1} parent=5 // pred_fallthru
        _
      %p103 = scmp.le.s32.totalorder 1, %s13
      %p104 = scmp.lt.s32.totalorder %s13, 3
      %p105 = pnand %p103, %p104
      %p106 = pneg %p105
      // Predicated region
      $region21: #{tpu_custom_call.1} parent=5 // pred_check
        _
      $region22: #{tpu_custom_call.1} parent=5 // pred_check_branch
        %108 = sbr.rel (%p105) target = $region24
      $region23: #{tpu_custom_call.1} parent=5 // pred_region
        %s109 = ssub.s32 %s13, 1
        %s110 = sand.u32 %s26, 1
        %s111 = scalar_lea.sflag [#allocation3], %s110
        %s112 = sand.u32 %s26, 1
        %s113 = smul.addr %s112, 64
        %s114 = scalar_lea.vmem [#allocation2], %s113
        // Predicated region
        $region25: #{tpu_custom_call.1} parent=23 // pred_check
          %p115 = pneg %p39
        $region26: #{tpu_custom_call.1} parent=23 // pred_check_branch
          %117 = sbr.rel (%p115) target = $region28
        $region27: #{tpu_custom_call.1} parent=23 // pred_region
          %118 = dma.done %s111, 1024
        $region28: #{tpu_custom_call.1} parent=23 // pred_fallthru
          _
        %s119 = sand.u32 %s26, 1
        %s120 = scalar_lea.sflag [#allocation3], %s119
        %s121 = sand.u32 %s26, 1
        %s122 = smul.addr %s121, 64
        %s123 = scalar_lea.vmem [#allocation2], %s122
        %p124 = pneg %p39
        %p125 = pneg %p36
        %p126 = pneg %p65
        %p127 = pneg %p62
        %s128 = sand.u32 %s52, 1
        %s129 = scalar_lea.sflag [#allocation4], %s128
        %s130 = sand.u32 %s52, 1
        %s131 = smul.addr %s130, 64
        %s132 = scalar_lea.vmem [#allocation5], %s131
        %v133 = vld [vmem:[%s114] sm:$0xff]
        %v134 = vld [vmem:[%s114 + $0x8] sm:$0xff]
        %v135 = vld [vmem:[%s114 + $0x10] sm:$0xff]
        %v136 = vld [vmem:[%s114 + $0x18] sm:$0xff]
        %v137 = vld [vmem:[%s114 + $0x20] sm:$0xff]
        %v138 = vld [vmem:[%s114 + $0x28] sm:$0xff]
        %v139 = vld [vmem:[%s114 + $0x30] sm:$0xff]
        %v140 = vld [vmem:[%s114 + $0x38] sm:$0xff]
        %v141 = vmul.f32 %v133, 100.0
        %v142 = vmul.f32 %v134, 100.0
        %v143 = vmul.f32 %v135, 100.0
        %v144 = vmul.f32 %v136, 100.0
        %v145 = vmul.f32 %v137, 100.0
        %v146 = vmul.f32 %v138, 100.0
        %v147 = vmul.f32 %v139, 100.0
        %v148 = vmul.f32 %v140, 100.0
        %v149 = vadd.f32 %v141, -10.0
        %v150 = vadd.f32 %v142, -10.0
        %v151 = vadd.f32 %v143, -10.0
        %v152 = vadd.f32 %v144, -10.0
        %v153 = vadd.f32 %v145, -10.0
        %v154 = vadd.f32 %v146, -10.0
        %v155 = vadd.f32 %v147, -10.0
        %v156 = vadd.f32 %v148, -10.0
        %v157 = vxor.u32 %v149, 2147483648
        %v158 = vxor.u32 %v150, 2147483648
        %v159 = vxor.u32 %v151, 2147483648
        %v160 = vxor.u32 %v152, 2147483648
        %v161 = vxor.u32 %v153, 2147483648
        %v162 = vxor.u32 %v154, 2147483648
        %v163 = vxor.u32 %v155, 2147483648
        %v164 = vxor.u32 %v156, 2147483648
        %v165 = vmul.f32 %v157, 1.442695
        %v166 = vpow.pop %v165
        %v167 = vmul.f32 %v158, 1.442695
        %v168 = vpow.pop %v167
        %v169 = vmul.f32 %v159, 1.442695
        %v170 = vpow.pop %v169
        %v171 = vmul.f32 %v160, 1.442695
        %v172 = vpow.pop %v171
        %v173 = vmul.f32 %v161, 1.442695
        %v174 = vpow.pop %v173
        %v175 = vmul.f32 %v162, 1.442695
        %v176 = vpow.pop %v175
        %v177 = vmul.f32 %v163, 1.442695
        %v178 = vpow.pop %v177
        %v179 = vmul.f32 %v164, 1.442695
        %v180 = vpow.pop %v179
        %v181 = vadd.f32 %v166, 1.0
        %v182 = vadd.f32 %v168, 1.0
        %v183 = vadd.f32 %v170, 1.0
        %v184 = vadd.f32 %v172, 1.0
        %v185 = vadd.f32 %v174, 1.0
        %v186 = vadd.f32 %v176, 1.0
        %v187 = vadd.f32 %v178, 1.0
        %v188 = vadd.f32 %v180, 1.0
        %v189 = vrcp.pop %v181
        %v190 = vmul.f32 1.0, %v189
        %v191 = vrcp.pop %v182
        %v192 = vmul.f32 1.0, %v191
        %v193 = vrcp.pop %v183
        %v194 = vmul.f32 1.0, %v193
        %v195 = vrcp.pop %v184
        %v196 = vmul.f32 1.0, %v195
        %v197 = vrcp.pop %v185
        %v198 = vmul.f32 1.0, %v197
        %v199 = vrcp.pop %v186
        %v200 = vmul.f32 1.0, %v199
        %v201 = vrcp.pop %v187
        %v202 = vmul.f32 1.0, %v201
        %v203 = vrcp.pop %v188
        %v204 = vmul.f32 1.0, %v203
        %205 = vst [vmem:[%s132] sm:$0xff] %v190
        %206 = vst [vmem:[%s132 + $0x8] sm:$0xff] %v192
        %207 = vst [vmem:[%s132 + $0x10] sm:$0xff] %v194
        %208 = vst [vmem:[%s132 + $0x18] sm:$0xff] %v196
        %209 = vst [vmem:[%s132 + $0x20] sm:$0xff] %v198
        %210 = vst [vmem:[%s132 + $0x28] sm:$0xff] %v200
        %211 = vst [vmem:[%s132 + $0x30] sm:$0xff] %v202
        %212 = vst [vmem:[%s132 + $0x38] sm:$0xff] %v204
        %s213 = sand.u32 %s52, 1
        %s214 = scalar_lea.sflag [#allocation4], %s213
        %s215 = sand.u32 %s52, 1
        %s216 = smul.addr %s215, 64
        %s217 = scalar_lea.vmem [#allocation5], %s216
        // Predicated region
        $region29: #{tpu_custom_call.1} parent=23 // pred_check
          %p218 = pneg %p62
        $region30: #{tpu_custom_call.1} parent=23 // pred_check_branch
          %220 = sbr.rel (%p218) target = $region32
        $region31: #{tpu_custom_call.1} parent=23 // pred_region
          %s222 = ssub.s32 1024, 1024
          %223 = vsyncadd %s214, %s222
          %s224 = smul.addr %s18, 8
          %s225 = smul.addr %s224, 128
          %s226 = scalar_lea.hbm %s1, %s225
          %s228 = sshll.u32 %s217, 4
          %s229 = int_to_ptr.vmem [resolvable:$true] %s228
          %231 = dma.vmem_to_hbm [thread:$0]  %s229, 1024, %s226, %s214
        $region32: #{tpu_custom_call.1} parent=23 // pred_fallthru
          _
      $region24: #{tpu_custom_call.1} parent=5 // pred_fallthru
        _
      %p232 = scmp.le.s32.totalorder 2, %s13
      // Predicated region
      $region33: #{tpu_custom_call.1} parent=5 // pred_check
        %p233 = pneg %p232
      $region34: #{tpu_custom_call.1} parent=5 // pred_check_branch
        %235 = sbr.rel (%p233) target = $region36
      $region35: #{tpu_custom_call.1} parent=5 // pred_region
        %s236 = ssub.s32 %s13, 2
        // Predicated region
        $region37: #{tpu_custom_call.1} parent=35 // pred_check
          %p237 = pneg %p68
        $region38: #{tpu_custom_call.1} parent=35 // pred_check_branch
          %239 = sbr.rel (%p237) target = $region40
        $region39: #{tpu_custom_call.1} parent=35 // pred_region
          %s240 = sand.u32 %s53, 1
          %s241 = scalar_lea.sflag [#allocation4], %s240
          %s242 = sand.u32 %s53, 1
          %s243 = smul.addr %s242, 64
          %s244 = scalar_lea.vmem [#allocation5], %s243
          %245 = dma.done %s241, 1024
        $region40: #{tpu_custom_call.1} parent=35 // pred_fallthru
          _
      $region36: #{tpu_custom_call.1} parent=5 // pred_fallthru
        _
    $region6: #{tpu_custom_call.1} parent=1 // loop_footer
      %s17 = sadd.s32 1, %s13
    $region7: #{tpu_custom_call.1} parent=1 // loop_footer_branch
      %12 = sbr.rel target = $region3
    $region8: #{tpu_custom_call.1} parent=1 // loop_exit
      _
    %246 = vsyncpa [#allocation3], 1
    %s247 = scalar_lea.sflag [#allocation3], 1
    %248 = vsyncpa %s247, 1
    %249 = vsyncpa [#allocation4], 1
    %s250 = scalar_lea.sflag [#allocation4], 1
    %251 = vsyncpa %s250, 1

</llo_original>
